<compile_context>
chip_gen: v5e
topology: v5e:2x2
jax: 0.10.0
libtpu: 0.0.40
codegen_flags: <defaults>
</compile_context>

<pallas_src>
import functools

import jax
import jax.numpy as jnp
from jax import lax
from jax.experimental import pallas as pl
from jax.experimental.pallas import tpu as pltpu

NUM_INPUTS = 28 * 28
NUM_HIDDENS1 = 256
NUM_HIDDENS2 = 256
NUM_OUTPUTS = 10
PADDED_OUTPUTS = 128            # lane-dense output slab (>= NUM_OUTPUTS)
DROPOUT_RATE1 = 0.2
DROPOUT_RATE2 = 0.5

# keep element iff bits >= round(p * 2**32)  ->  P(keep) = 1 - p
_THRESH1 = int(round(DROPOUT_RATE1 * (1 << 32)))   # 858993459
_THRESH2 = int(round(DROPOUT_RATE2 * (1 << 32)))   # 2147483648
_SCALE1 = 1.0 / (1.0 - DROPOUT_RATE1)
_SCALE2 = 1.0 / (1.0 - DROPOUT_RATE2)


def _round_up(n, m):
    return ((n + m - 1) // m) * m


def _mix32(x):
    """murmur3 fmix32 finalizer on uint32 arrays (pure VPU integer ops)."""
    x = x ^ (x >> 16)
    x = x * jnp.uint32(0x7FEB352D)
    x = x ^ (x >> 15)
    x = x * jnp.uint32(0x846CA68B)
    x = x ^ (x >> 16)
    return x


def _random_bits(global_idx, seed_u32, salt):
    """Counter-based stateless uniform uint32 bits keyed by (index, seed, salt)."""
    x = global_idx * jnp.uint32(0x9E3779B1) + seed_u32 * jnp.uint32(0x85EBCA77)
    x = x ^ jnp.uint32(salt)
    x = _mix32(x)
    x = x ^ seed_u32
    x = _mix32(x)
    return x


def _dropout(h, bits, thresh, scale):
    # integer-threshold compare: keep iff bits >= thresh, rescale kept values
    return jnp.where(bits >= jnp.uint32(thresh),
                     h * jnp.float32(scale),
                     jnp.float32(0.0))


def mlp_dropout_kernel(seed_ref,                      # scalar prefetch (SMEM)
                       x_ref, w1_ref, b1_ref, w2_ref, b2_ref, w3_ref, b3_ref,
                       out_ref):
    tb = x_ref.shape[0]
    seed = seed_ref[0].astype(jnp.uint32)

    # Global element indices for this batch tile; reused for both dropout
    # layers with different salts -> unique mask per element, per tile.
    row0 = (pl.program_id(0) * tb).astype(jnp.uint32)
    rows = lax.broadcasted_iota(jnp.int32, (tb, NUM_HIDDENS1), 0).astype(jnp.uint32) + row0
    cols = lax.broadcasted_iota(jnp.int32, (tb, NUM_HIDDENS1), 1).astype(jnp.uint32)
    idx = rows * jnp.uint32(NUM_HIDDENS1) + cols

    x = x_ref[...]                                                    # (TB, 784)

    h1 = jnp.dot(x, w1_ref[...], preferred_element_type=jnp.float32) + b1_ref[...]
    h1 = jnp.maximum(h1, 0.0)
    h1 = _dropout(h1, _random_bits(idx, seed, 0x3C6EF372), _THRESH1, _SCALE1)

    h1 = h1.astype(w2_ref.dtype)
    h2 = jnp.dot(h1, w2_ref[...], preferred_element_type=jnp.float32) + b2_ref[...]
    h2 = jnp.maximum(h2, 0.0)
    h2 = _dropout(h2, _random_bits(idx, seed, 0xA54FF53A), _THRESH2, _SCALE2)

    h2 = h2.astype(w3_ref.dtype)
    out = jnp.dot(h2, w3_ref[...], preferred_element_type=jnp.float32) + b3_ref[...]
    out_ref[...] = out.astype(out_ref.dtype)                          # (TB, 128)


@functools.partial(jax.jit, static_argnames=("compute_dtype",))
def net_forward(x, w1, b1, w2, b2, w3, b3, seed, *, compute_dtype=jnp.float32):
    """Training-mode forward pass of the `net` module."""
    B = x.shape[0]
    x2 = x.reshape(B, NUM_INPUTS).astype(compute_dtype)

    # Batch tiling: TB rows per grid step (512 at training scale, small
    # multiple of 8 for toy batches); pad batch up to a multiple of TB.
    TB = min(512, _round_up(B, 8))
    B_pad = _round_up(B, TB)
    if B_pad != B:
        x2 = jnp.pad(x2, ((0, B_pad - B), (0, 0)))

    # Lane-dense final layer: zero-pad (256,10)->(256,128) and (1,10)->(1,128).
    w3p = jnp.pad(w3, ((0, 0), (0, PADDED_OUTPUTS - NUM_OUTPUTS))).astype(compute_dtype)
    b3p = jnp.pad(b3, ((0, 0), (0, PADDED_OUTPUTS - NUM_OUTPUTS)))
    w1c = w1.astype(compute_dtype)
    w2c = w2.astype(compute_dtype)

    seed_arr = jnp.asarray(seed, dtype=jnp.int32).reshape(1)

    esz = jnp.dtype(compute_dtype).itemsize
    flops = 2 * B_pad * (NUM_INPUTS * NUM_HIDDENS1
                         + NUM_HIDDENS1 * NUM_HIDDENS2
                         + NUM_HIDDENS2 * PADDED_OUTPUTS)
    bytes_accessed = (B_pad * NUM_INPUTS * esz
                      + B_pad * PADDED_OUTPUTS * 4
                      + (NUM_INPUTS * NUM_HIDDENS1 + NUM_HIDDENS1 * NUM_HIDDENS2
                         + NUM_HIDDENS2 * PADDED_OUTPUTS) * esz
                      + (NUM_HIDDENS1 + NUM_HIDDENS2 + PADDED_OUTPUTS) * 4)

    grid_spec = pltpu.PrefetchScalarGridSpec(
        num_scalar_prefetch=1,
        grid=(B_pad // TB,),
        in_specs=[
            pl.BlockSpec((TB, NUM_INPUTS), lambda i, s: (i, 0)),
            pl.BlockSpec((NUM_INPUTS, NUM_HIDDENS1), lambda i, s: (0, 0)),
            pl.BlockSpec((1, NUM_HIDDENS1), lambda i, s: (0, 0)),
            pl.BlockSpec((NUM_HIDDENS1, NUM_HIDDENS2), lambda i, s: (0, 0)),
            pl.BlockSpec((1, NUM_HIDDENS2), lambda i, s: (0, 0)),
            pl.BlockSpec((NUM_HIDDENS2, PADDED_OUTPUTS), lambda i, s: (0, 0)),
            pl.BlockSpec((1, PADDED_OUTPUTS), lambda i, s: (0, 0)),
        ],
        out_specs=pl.BlockSpec((TB, PADDED_OUTPUTS), lambda i, s: (i, 0)),
    )

    out = pl.pallas_call(
        mlp_dropout_kernel,
        out_shape=jax.ShapeDtypeStruct((B_pad, PADDED_OUTPUTS), jnp.float32),
        grid_spec=grid_spec,
        compiler_params=pltpu.CompilerParams(
            dimension_semantics=("parallel",)),
        cost_estimate=pl.CostEstimate(
            flops=flops, transcendentals=0, bytes_accessed=bytes_accessed),
    )(seed_arr, x2, w1c, b1, w2c, b2, w3p, b3p)

    return out[:B, :NUM_OUTPUTS]


def init_params(key):
    """Deterministic torch.nn.Linear-style init: U(-1/sqrt(fan_in), 1/sqrt(fan_in))."""
    def linear(k, fan_in, fan_out):
        kw, kb = jax.random.split(k)
        bound = 1.0 / jnp.sqrt(fan_in)
        w = jax.random.uniform(kw, (fan_in, fan_out), jnp.float32, -bound, bound)
        b = jax.random.uniform(kb, (1, fan_out), jnp.float32, -bound, bound)
        return w, b

    k1, k2, k3 = jax.random.split(key, 3)
    w1, b1 = linear(k1, NUM_INPUTS, NUM_HIDDENS1)
    w2, b2 = linear(k2, NUM_HIDDENS1, NUM_HIDDENS2)
    w3, b3 = linear(k3, NUM_HIDDENS2, NUM_OUTPUTS)
    return w1, b1, w2, b2, w3, b3


if __name__ == "__main__":
    root = jax.random.PRNGKey(0)
    kx, kp = jax.random.split(root)

    B = 8
    x = jax.random.normal(kx, (B, 1, 28, 28), dtype=jnp.float32)   # NCHW, like MNIST
    params = init_params(kp)

    out = net_forward(x, *params, seed=1234)
    out = jax.block_until_ready(out)

    assert out.shape == (B, NUM_OUTPUTS)
    assert out.dtype == jnp.float32
    assert bool(jnp.all(jnp.isfinite(out)))
    print("KERNEL_OK")
</pallas_src>

<mosaic_0001>
module attributes {stable_mosaic.version = 11 : i64} {
  func.func @mlp_dropout_kernel(%arg0: i32, %arg1: memref<1xi32, #tpu.memory_space<smem>>, %arg2: memref<8x784xf32, #tpu.memory_space<vmem>>, %arg3: memref<784x256xf32, #tpu.memory_space<vmem>>, %arg4: memref<1x256xf32, #tpu.memory_space<vmem>>, %arg5: memref<256x256xf32, #tpu.memory_space<vmem>>, %arg6: memref<1x256xf32, #tpu.memory_space<vmem>>, %arg7: memref<256x128xf32, #tpu.memory_space<vmem>>, %arg8: memref<1x128xf32, #tpu.memory_space<vmem>>, %arg9: memref<8x128xf32, #tpu.memory_space<vmem>>) attributes {dimension_semantics = [#tpu.dimension_semantics<parallel>], iteration_bounds = array<i64: 1>, scalar_prefetch = 1 : i64, scratch_operands = 0 : i64, tpu.core_type = #tpu.core_type<tc>, window_params = [{transform_indices = @transform_0, window_bounds = array<i64: 8, 784>}, {pipeline_mode = #tpu.pipeline_mode<synchronous>, transform_indices = @transform_1, window_bounds = array<i64: 784, 256>}, {pipeline_mode = #tpu.pipeline_mode<synchronous>, transform_indices = @transform_2, window_bounds = array<i64: 1, 256>}, {pipeline_mode = #tpu.pipeline_mode<synchronous>, transform_indices = @transform_3, window_bounds = array<i64: 256, 256>}, {pipeline_mode = #tpu.pipeline_mode<synchronous>, transform_indices = @transform_4, window_bounds = array<i64: 1, 256>}, {pipeline_mode = #tpu.pipeline_mode<synchronous>, transform_indices = @transform_5, window_bounds = array<i64: 256, 128>}, {pipeline_mode = #tpu.pipeline_mode<synchronous>, transform_indices = @transform_6, window_bounds = array<i64: 1, 128>}, {transform_indices = @transform_7, window_bounds = array<i64: 8, 128>}]} {
    %c0 = arith.constant 0 : index
    %0 = memref.load %arg1[%c0] : memref<1xi32, #tpu.memory_space<smem>>
    %c8_i32 = arith.constant 8 : i32
    %1 = arith.muli %arg0, %c8_i32 : i32
    %2 = tpu.iota {dimensions = array<i32: 0>} : vector<8x256xi32>
    %3 = vector.broadcast %1 : i32 to vector<8x256xi32>
    %4 = arith.addi %2, %3 : vector<8x256xi32>
    %5 = tpu.iota {dimensions = array<i32: 1>} : vector<8x256xi32>
    %c256_i32 = arith.constant 256 : i32
    %6 = vector.broadcast %c256_i32 : i32 to vector<8x256xi32>
    %7 = arith.muli %4, %6 : vector<8x256xi32>
    %8 = arith.addi %7, %5 : vector<8x256xi32>
    %c0_0 = arith.constant 0 : index
    %c0_1 = arith.constant 0 : index
    %9 = vector.load %arg2[%c0_0, %c0_1] : memref<8x784xf32, #tpu.memory_space<vmem>>, vector<8x784xf32>
    %c0_2 = arith.constant 0 : index
    %c0_3 = arith.constant 0 : index
    %10 = vector.load %arg3[%c0_2, %c0_3] : memref<784x256xf32, #tpu.memory_space<vmem>>, vector<784x256xf32>
    %cst = arith.constant dense<0.000000e+00> : vector<8x256xf32>
    %11 = tpu.matmul %9, %10, %cst {dimension_numbers = #tpu.dot_dimension_numbers<[1], [0], [0], [1], [0, 0, 1, 1], [], []>} : vector<8x784xf32>, vector<784x256xf32>, vector<8x256xf32> -> vector<8x256xf32>
    %c0_4 = arith.constant 0 : index
    %c0_5 = arith.constant 0 : index
    %12 = vector.load %arg4[%c0_4, %c0_5] : memref<1x256xf32, #tpu.memory_space<vmem>>, vector<1x256xf32>
    %13 = vector.broadcast %12 : vector<1x256xf32> to vector<8x256xf32>
    %14 = arith.addf %11, %13 : vector<8x256xf32>
    %cst_6 = arith.constant 0.000000e+00 : f32
    %15 = vector.broadcast %cst_6 : f32 to vector<8x256xf32>
    %16 = arith.maximumf %14, %15 : vector<8x256xf32>
    %c-1640531535_i32 = arith.constant -1640531535 : i32
    %17 = vector.broadcast %c-1640531535_i32 : i32 to vector<8x256xi32>
    %18 = arith.muli %8, %17 : vector<8x256xi32>
    %c-2048144777_i32 = arith.constant -2048144777 : i32
    %19 = arith.muli %0, %c-2048144777_i32 : i32
    %20 = vector.broadcast %19 : i32 to vector<8x256xi32>
    %21 = arith.addi %18, %20 : vector<8x256xi32>
    %c1013904242_i32 = arith.constant 1013904242 : i32
    %22 = vector.broadcast %c1013904242_i32 : i32 to vector<8x256xi32>
    %23 = arith.xori %21, %22 : vector<8x256xi32>
    %c16_i32 = arith.constant 16 : i32
    %24 = vector.broadcast %c16_i32 : i32 to vector<8x256xi32>
    %25 = arith.shrui %23, %24 : vector<8x256xi32>
    %26 = arith.xori %23, %25 : vector<8x256xi32>
    %c2146121005_i32 = arith.constant 2146121005 : i32
    %27 = vector.broadcast %c2146121005_i32 : i32 to vector<8x256xi32>
    %28 = arith.muli %26, %27 : vector<8x256xi32>
    %c15_i32 = arith.constant 15 : i32
    %29 = vector.broadcast %c15_i32 : i32 to vector<8x256xi32>
    %30 = arith.shrui %28, %29 : vector<8x256xi32>
    %31 = arith.xori %28, %30 : vector<8x256xi32>
    %c-2073254261_i32 = arith.constant -2073254261 : i32
    %32 = vector.broadcast %c-2073254261_i32 : i32 to vector<8x256xi32>
    %33 = arith.muli %31, %32 : vector<8x256xi32>
    %c16_i32_7 = arith.constant 16 : i32
    %34 = vector.broadcast %c16_i32_7 : i32 to vector<8x256xi32>
    %35 = arith.shrui %33, %34 : vector<8x256xi32>
    %36 = arith.xori %33, %35 : vector<8x256xi32>
    %37 = vector.broadcast %0 : i32 to vector<8x256xi32>
    %38 = arith.xori %36, %37 : vector<8x256xi32>
    %c16_i32_8 = arith.constant 16 : i32
    %39 = vector.broadcast %c16_i32_8 : i32 to vector<8x256xi32>
    %40 = arith.shrui %38, %39 : vector<8x256xi32>
    %41 = arith.xori %38, %40 : vector<8x256xi32>
    %c2146121005_i32_9 = arith.constant 2146121005 : i32
    %42 = vector.broadcast %c2146121005_i32_9 : i32 to vector<8x256xi32>
    %43 = arith.muli %41, %42 : vector<8x256xi32>
    %c15_i32_10 = arith.constant 15 : i32
    %44 = vector.broadcast %c15_i32_10 : i32 to vector<8x256xi32>
    %45 = arith.shrui %43, %44 : vector<8x256xi32>
    %46 = arith.xori %43, %45 : vector<8x256xi32>
    %c-2073254261_i32_11 = arith.constant -2073254261 : i32
    %47 = vector.broadcast %c-2073254261_i32_11 : i32 to vector<8x256xi32>
    %48 = arith.muli %46, %47 : vector<8x256xi32>
    %c16_i32_12 = arith.constant 16 : i32
    %49 = vector.broadcast %c16_i32_12 : i32 to vector<8x256xi32>
    %50 = arith.shrui %48, %49 : vector<8x256xi32>
    %51 = arith.xori %48, %50 : vector<8x256xi32>
    %c858993459_i32 = arith.constant 858993459 : i32
    %52 = vector.broadcast %c858993459_i32 : i32 to vector<8x256xi32>
    %53 = arith.cmpi uge, %51, %52 : vector<8x256xi32>
    %cst_13 = arith.constant 1.250000e+00 : f32
    %54 = vector.broadcast %cst_13 : f32 to vector<8x256xf32>
    %55 = arith.mulf %16, %54 : vector<8x256xf32>
    %cst_14 = arith.constant 0.000000e+00 : f32
    %56 = vector.broadcast %cst_14 : f32 to vector<8x256xf32>
    %57 = arith.select %53, %55, %56 : vector<8x256xi1>, vector<8x256xf32>
    %c0_15 = arith.constant 0 : index
    %c0_16 = arith.constant 0 : index
    %58 = vector.load %arg5[%c0_15, %c0_16] : memref<256x256xf32, #tpu.memory_space<vmem>>, vector<256x256xf32>
    %cst_17 = arith.constant dense<0.000000e+00> : vector<8x256xf32>
    %59 = tpu.matmul %57, %58, %cst_17 {dimension_numbers = #tpu.dot_dimension_numbers<[1], [0], [0], [1], [0, 0, 1, 1], [], []>} : vector<8x256xf32>, vector<256x256xf32>, vector<8x256xf32> -> vector<8x256xf32>
    %c0_18 = arith.constant 0 : index
    %c0_19 = arith.constant 0 : index
    %60 = vector.load %arg6[%c0_18, %c0_19] : memref<1x256xf32, #tpu.memory_space<vmem>>, vector<1x256xf32>
    %61 = vector.broadcast %60 : vector<1x256xf32> to vector<8x256xf32>
    %62 = arith.addf %59, %61 : vector<8x256xf32>
    %cst_20 = arith.constant 0.000000e+00 : f32
    %63 = vector.broadcast %cst_20 : f32 to vector<8x256xf32>
    %64 = arith.maximumf %62, %63 : vector<8x256xf32>
    %c-1640531535_i32_21 = arith.constant -1640531535 : i32
    %65 = vector.broadcast %c-1640531535_i32_21 : i32 to vector<8x256xi32>
    %66 = arith.muli %8, %65 : vector<8x256xi32>
    %c-2048144777_i32_22 = arith.constant -2048144777 : i32
    %67 = arith.muli %0, %c-2048144777_i32_22 : i32
    %68 = vector.broadcast %67 : i32 to vector<8x256xi32>
    %69 = arith.addi %66, %68 : vector<8x256xi32>
    %c-1521486534_i32 = arith.constant -1521486534 : i32
    %70 = vector.broadcast %c-1521486534_i32 : i32 to vector<8x256xi32>
    %71 = arith.xori %69, %70 : vector<8x256xi32>
    %c16_i32_23 = arith.constant 16 : i32
    %72 = vector.broadcast %c16_i32_23 : i32 to vector<8x256xi32>
    %73 = arith.shrui %71, %72 : vector<8x256xi32>
    %74 = arith.xori %71, %73 : vector<8x256xi32>
    %c2146121005_i32_24 = arith.constant 2146121005 : i32
    %75 = vector.broadcast %c2146121005_i32_24 : i32 to vector<8x256xi32>
    %76 = arith.muli %74, %75 : vector<8x256xi32>
    %c15_i32_25 = arith.constant 15 : i32
    %77 = vector.broadcast %c15_i32_25 : i32 to vector<8x256xi32>
    %78 = arith.shrui %76, %77 : vector<8x256xi32>
    %79 = arith.xori %76, %78 : vector<8x256xi32>
    %c-2073254261_i32_26 = arith.constant -2073254261 : i32
    %80 = vector.broadcast %c-2073254261_i32_26 : i32 to vector<8x256xi32>
    %81 = arith.muli %79, %80 : vector<8x256xi32>
    %c16_i32_27 = arith.constant 16 : i32
    %82 = vector.broadcast %c16_i32_27 : i32 to vector<8x256xi32>
    %83 = arith.shrui %81, %82 : vector<8x256xi32>
    %84 = arith.xori %81, %83 : vector<8x256xi32>
    %85 = vector.broadcast %0 : i32 to vector<8x256xi32>
    %86 = arith.xori %84, %85 : vector<8x256xi32>
    %c16_i32_28 = arith.constant 16 : i32
    %87 = vector.broadcast %c16_i32_28 : i32 to vector<8x256xi32>
    %88 = arith.shrui %86, %87 : vector<8x256xi32>
    %89 = arith.xori %86, %88 : vector<8x256xi32>
    %c2146121005_i32_29 = arith.constant 2146121005 : i32
    %90 = vector.broadcast %c2146121005_i32_29 : i32 to vector<8x256xi32>
    %91 = arith.muli %89, %90 : vector<8x256xi32>
    %c15_i32_30 = arith.constant 15 : i32
    %92 = vector.broadcast %c15_i32_30 : i32 to vector<8x256xi32>
    %93 = arith.shrui %91, %92 : vector<8x256xi32>
    %94 = arith.xori %91, %93 : vector<8x256xi32>
    %c-2073254261_i32_31 = arith.constant -2073254261 : i32
    %95 = vector.broadcast %c-2073254261_i32_31 : i32 to vector<8x256xi32>
    %96 = arith.muli %94, %95 : vector<8x256xi32>
    %c16_i32_32 = arith.constant 16 : i32
    %97 = vector.broadcast %c16_i32_32 : i32 to vector<8x256xi32>
    %98 = arith.shrui %96, %97 : vector<8x256xi32>
    %99 = arith.xori %96, %98 : vector<8x256xi32>
    %c-2147483648_i32 = arith.constant -2147483648 : i32
    %100 = vector.broadcast %c-2147483648_i32 : i32 to vector<8x256xi32>
    %101 = arith.cmpi uge, %99, %100 : vector<8x256xi32>
    %cst_33 = arith.constant 2.000000e+00 : f32
    %102 = vector.broadcast %cst_33 : f32 to vector<8x256xf32>
    %103 = arith.mulf %64, %102 : vector<8x256xf32>
    %cst_34 = arith.constant 0.000000e+00 : f32
    %104 = vector.broadcast %cst_34 : f32 to vector<8x256xf32>
    %105 = arith.select %101, %103, %104 : vector<8x256xi1>, vector<8x256xf32>
    %c0_35 = arith.constant 0 : index
    %c0_36 = arith.constant 0 : index
    %106 = vector.load %arg7[%c0_35, %c0_36] : memref<256x128xf32, #tpu.memory_space<vmem>>, vector<256x128xf32>
    %cst_37 = arith.constant dense<0.000000e+00> : vector<8x128xf32>
    %107 = tpu.matmul %105, %106, %cst_37 {dimension_numbers = #tpu.dot_dimension_numbers<[1], [0], [0], [1], [0, 0, 1, 1], [], []>} : vector<8x256xf32>, vector<256x128xf32>, vector<8x128xf32> -> vector<8x128xf32>
    %c0_38 = arith.constant 0 : index
    %c0_39 = arith.constant 0 : index
    %108 = vector.load %arg8[%c0_38, %c0_39] : memref<1x128xf32, #tpu.memory_space<vmem>>, vector<1x128xf32>
    %109 = vector.broadcast %108 : vector<1x128xf32> to vector<8x128xf32>
    %110 = arith.addf %107, %109 : vector<8x128xf32>
    %c0_40 = arith.constant 0 : index
    %c0_41 = arith.constant 0 : index
    %111 = vector.load %arg9[%c0_40, %c0_41] : memref<8x128xf32, #tpu.memory_space<vmem>>, vector<8x128xf32>
    tpu.vector_store %arg9[%c0_40, %c0_41], %110 {strides = array<i32>} : memref<8x128xf32, #tpu.memory_space<vmem>>, vector<8x128xf32>,
    return
  }
  func.func @transform_0(%arg0: i32, %arg1: memref<1xi32, #tpu.memory_space<smem>>) -> (i32, i32) {
    %c0_i32 = arith.constant 0 : i32
    %c0_i32_0 = arith.constant 0 : i32
    return %arg0, %c0_i32 : i32, i32
  }
  func.func @transform_1(%arg0: i32, %arg1: memref<1xi32, #tpu.memory_space<smem>>) -> (i32, i32) {
    %c0_i32 = arith.constant 0 : i32
    %c0_i32_0 = arith.constant 0 : i32
    %c0_i32_1 = arith.constant 0 : i32
    return %c0_i32, %c0_i32_0 : i32, i32
  }
  func.func @transform_2(%arg0: i32, %arg1: memref<1xi32, #tpu.memory_space<smem>>) -> (i32, i32) {
    %c0_i32 = arith.constant 0 : i32
    %c0_i32_0 = arith.constant 0 : i32
    %c0_i32_1 = arith.constant 0 : i32
    return %c0_i32, %c0_i32_0 : i32, i32
  }
  func.func @transform_3(%arg0: i32, %arg1: memref<1xi32, #tpu.memory_space<smem>>) -> (i32, i32) {
    %c0_i32 = arith.constant 0 : i32
    %c0_i32_0 = arith.constant 0 : i32
    %c0_i32_1 = arith.constant 0 : i32
    return %c0_i32, %c0_i32_0 : i32, i32
  }
  func.func @transform_4(%arg0: i32, %arg1: memref<1xi32, #tpu.memory_space<smem>>) -> (i32, i32) {
    %c0_i32 = arith.constant 0 : i32
    %c0_i32_0 = arith.constant 0 : i32
    %c0_i32_1 = arith.constant 0 : i32
    return %c0_i32, %c0_i32_0 : i32, i32
  }
  func.func @transform_5(%arg0: i32, %arg1: memref<1xi32, #tpu.memory_space<smem>>) -> (i32, i32) {
    %c0_i32 = arith.constant 0 : i32
    %c0_i32_0 = arith.constant 0 : i32
    %c0_i32_1 = arith.constant 0 : i32
    return %c0_i32, %c0_i32_0 : i32, i32
  }
  func.func @transform_6(%arg0: i32, %arg1: memref<1xi32, #tpu.memory_space<smem>>) -> (i32, i32) {
    %c0_i32 = arith.constant 0 : i32
    %c0_i32_0 = arith.constant 0 : i32
    %c0_i32_1 = arith.constant 0 : i32
    return %c0_i32, %c0_i32_0 : i32, i32
  }
  func.func @transform_7(%arg0: i32, %arg1: memref<1xi32, #tpu.memory_space<smem>>) -> (i32, i32) {
    %c0_i32 = arith.constant 0 : i32
    %c0_i32_0 = arith.constant 0 : i32
    return %arg0, %c0_i32 : i32, i32
  }
}

</mosaic_0001>

<llo_original>
// kernel: net_forward.1
$region0: #{net_forward.1}
  #allocation0 [shape = 'u32[]', space=smem, size = 0x4, offset = 0x4, fixed_abs, tag = 'smem constant byte address 0x4 - core index']
  #allocation1 [shape = 'u32[72,128]{1,0:T(1,128)}', space=vmem, size = 0x9000, scoped, tag = 'internal scratch']
  #allocation2 [shape = 's32[1]{0}', space=sflag, size = 0x4, scoped, tag = 'scoped memory for net_forward.1']
  #allocation3 [shape = 's32[1]{0:T(128)S(6)}', space=smem, size = 0x200, scoped, tag = 'prefetched SMEM operand 0']
  %s0 = inlined_call_operand.<no memory space> [shape: s32[1], index: 0, kind: input, shape index: {}]
  %s1 = inlined_call_operand.vmem [shape: f32[8,784], index: 1, kind: input, shape index: {}]
  %s2 = inlined_call_operand.vmem [shape: f32[784,256], index: 2, kind: input, shape index: {}]
  %s3 = inlined_call_operand.vmem [shape: f32[1,256], index: 3, kind: input, shape index: {}]
  %s4 = inlined_call_operand.hbm [shape: f32[256,256], index: 4, kind: input, shape index: {}]
  %s5 = inlined_call_operand.vmem [shape: f32[1,256], index: 5, kind: input, shape index: {}]
  %s6 = inlined_call_operand.vmem [shape: f32[256,128], index: 6, kind: input, shape index: {}]
  %s7 = inlined_call_operand.vmem [shape: f32[1,128], index: 7, kind: input, shape index: {}]
  %s8 = inlined_call_operand.hbm [shape: f32[8,128], index: 8, kind: output, shape index: {}]
  %s9 = sld [smem:[#allocation0]]
  $region42: #{net_forward.1} parent=0
    _
  %s11 = ssub.s32 1, %s9
  %s12 = scalar_select 0, %s11, %s9
  %13 = sst [smem:[#allocation3]] %s0
  $region1: #{net_forward.1} parent=0
    #allocation4 [shape = 'u8[262144]{0}', space=vmem, size = 0x40000, scoped, tag = 'input window, operand 4, single buffered']
    #allocation5 [shape = 's32[1]{0}', space=sflag, size = 0x4, scoped, tag = 'scoped memory for net_forward.1']
    #allocation6 [shape = 's32[1]{0}', space=sflag, size = 0x4, scoped, tag = 'scoped memory for net_forward.1']
    #allocation7 [shape = 'u8[4096]{0}', space=vmem, size = 0x1000, scoped, tag = 'output window, operand 0, single buffered']
    %14 = vsyncpa [#allocation5], 0
    %15 = vsyncpa [#allocation6], 0
    // Predicated region
    $region2: #{net_forward.1} parent=1 // pred_check
      _
    $region3: #{net_forward.1} parent=1 // pred_check_branch
      %17 = sbr.rel (0) target = $region5
    $region4: #{net_forward.1} parent=1 // pred_region
      _
    $region5: #{net_forward.1} parent=1 // pred_fallthru
      _
    // Predicated region
    $region6: #{net_forward.1} parent=1 // pred_check
      _
    $region7: #{net_forward.1} parent=1 // pred_check_branch
      %19 = sbr.rel (0) target = $region9
    $region8: #{net_forward.1} parent=1 // pred_region
      _
    $region9: #{net_forward.1} parent=1 // pred_fallthru
      _
    // Predicated region
    $region10: #{net_forward.1} parent=1 // pred_check
      _
    $region11: #{net_forward.1} parent=1 // pred_check_branch
      %21 = sbr.rel (0) target = $region13
    $region12: #{net_forward.1} parent=1 // pred_region
      _
    $region13: #{net_forward.1} parent=1 // pred_fallthru
      _
    // Predicated region
    $region14: #{net_forward.1} parent=1 // pred_check
      _
    $region15: #{net_forward.1} parent=1 // pred_check_branch
      %23 = sbr.rel (0) target = $region17
    $region16: #{net_forward.1} parent=1 // pred_region
      %25 = vsyncadd [#allocation5], 0
      %s26 = sshll.u32 %s4, 4
      %s27 = int_to_ptr.hbm [resolvable:$true] %s26
      %s28 = sshll.u32 [#allocation4], 4
      %s29 = int_to_ptr.vmem [resolvable:$true] %s28
      %34 = dma.hbm_to_vmem [thread:$0]  %s27, 8192, %s29, [#allocation5], 256, 256, 16
    $region17: #{net_forward.1} parent=1 // pred_fallthru
      _
    // Predicated region
    $region18: #{net_forward.1} parent=1 // pred_check
      _
    $region19: #{net_forward.1} parent=1 // pred_check_branch
      %36 = sbr.rel (0) target = $region21
    $region20: #{net_forward.1} parent=1 // pred_region
      _
    $region21: #{net_forward.1} parent=1 // pred_fallthru
      _
    // Predicated region
    $region22: #{net_forward.1} parent=1 // pred_check
      _
    $region23: #{net_forward.1} parent=1 // pred_check_branch
      %38 = sbr.rel (0) target = $region25
    $region24: #{net_forward.1} parent=1 // pred_region
      _
    $region25: #{net_forward.1} parent=1 // pred_fallthru
      _
    // Predicated region
    $region26: #{net_forward.1} parent=1 // pred_check
      _
    $region27: #{net_forward.1} parent=1 // pred_check_branch
      %40 = sbr.rel (0) target = $region29
    $region28: #{net_forward.1} parent=1 // pred_region
      _
    $region29: #{net_forward.1} parent=1 // pred_fallthru
      _
    // Predicated region
    $region30: #{net_forward.1} parent=1 // pred_check
      _
    $region31: #{net_forward.1} parent=1 // pred_check_branch
      %42 = sbr.rel (0) target = $region33
    $region32: #{net_forward.1} parent=1 // pred_region
      %44 = dma.done [#allocation5], 8192
    $region33: #{net_forward.1} parent=1 // pred_fallthru
      _
    %s45 = sld [smem:[#allocation3]]
    %s46 = smul.u32 0, 8
    %v47 = vlaneseq
    %v48 = vshrl.u32 %v47, 7
    %v49 = vstv %s46
    %v50 = vadd.s32 %v48, %v49
    %v51 = vlaneseq
    %v52 = vand.u32 %v51, 127
    %v53 = vadd.s32 %v52, 128
    %v54 = vmul.u32 %v50, 256
    %v55 = vadd.s32 %v54, %v52
    %v56 = vadd.s32 %v54, %v53
    %v57 = vld [vmem:[%s1] sm:$0xff]
    %v58 = vld [vmem:[%s1 + $0x8] sm:$0xff]
    %v59 = vld [vmem:[%s1 + $0x10] sm:$0xff]
    %v60 = vld [vmem:[%s1 + $0x18] sm:$0xff]
    %v61 = vld [vmem:[%s1 + $0x20] sm:$0xff]
    %v62 = vld [vmem:[%s1 + $0x28] sm:$0xff]
    %v63 = vld [vmem:[%s1 + $0x30] sm:$0xff]
    %v64 = vld [vmem:[%s2] sm:$0xff]
    %v65 = vld [vmem:[%s2 + $0x8] sm:$0xff]
    %v66 = vld [vmem:[%s2 + $0x10] sm:$0xff]
    %v67 = vld [vmem:[%s2 + $0x18] sm:$0xff]
    %v68 = vld [vmem:[%s2 + $0x20] sm:$0xff]
    %v69 = vld [vmem:[%s2 + $0x28] sm:$0xff]
    %v70 = vld [vmem:[%s2 + $0x30] sm:$0xff]
    %v71 = vld [vmem:[%s2 + $0x38] sm:$0xff]
    %v72 = vld [vmem:[%s2 + $0x40] sm:$0xff]
    %v73 = vld [vmem:[%s2 + $0x48] sm:$0xff]
    %v74 = vld [vmem:[%s2 + $0x50] sm:$0xff]
    %v75 = vld [vmem:[%s2 + $0x58] sm:$0xff]
    %v76 = vld [vmem:[%s2 + $0x60] sm:$0xff]
    %v77 = vld [vmem:[%s2 + $0x68] sm:$0xff]
    %v78 = vld [vmem:[%s2 + $0x70] sm:$0xff]
    %v79 = vld [vmem:[%s2 + $0x78] sm:$0xff]
    %v80 = vld [vmem:[%s2 + $0x80] sm:$0xff]
    %v81 = vld [vmem:[%s2 + $0x88] sm:$0xff]
    %v82 = vld [vmem:[%s2 + $0x90] sm:$0xff]
    %v83 = vld [vmem:[%s2 + $0x98] sm:$0xff]
    %v84 = vld [vmem:[%s2 + $0xa0] sm:$0xff]
    %v85 = vld [vmem:[%s2 + $0xa8] sm:$0xff]
    %v86 = vld [vmem:[%s2 + $0xb0] sm:$0xff]
    %v87 = vld [vmem:[%s2 + $0xb8] sm:$0xff]
    %v88 = vld [vmem:[%s2 + $0xc0] sm:$0xff]
    %v89 = vld [vmem:[%s2 + $0xc8] sm:$0xff]
    %v90 = vld [vmem:[%s2 + $0xd0] sm:$0xff]
    %v91 = vld [vmem:[%s2 + $0xd8] sm:$0xff]
    %v92 = vld [vmem:[%s2 + $0xe0] sm:$0xff]
    %v93 = vld [vmem:[%s2 + $0xe8] sm:$0xff]
    %v94 = vld [vmem:[%s2 + $0xf0] sm:$0xff]
    %v95 = vld [vmem:[%s2 + $0xf8] sm:$0xff]
    %v96 = vld [vmem:[%s2 + $0x100] sm:$0xff]
    %v97 = vld [vmem:[%s2 + $0x108] sm:$0xff]
    %v98 = vld [vmem:[%s2 + $0x110] sm:$0xff]
    %v99 = vld [vmem:[%s2 + $0x118] sm:$0xff]
    %v100 = vld [vmem:[%s2 + $0x120] sm:$0xff]
    %v101 = vld [vmem:[%s2 + $0x128] sm:$0xff]
    %v102 = vld [vmem:[%s2 + $0x130] sm:$0xff]
    %v103 = vld [vmem:[%s2 + $0x138] sm:$0xff]
    %v104 = vld [vmem:[%s2 + $0x140] sm:$0xff]
    %v105 = vld [vmem:[%s2 + $0x148] sm:$0xff]
    %v106 = vld [vmem:[%s2 + $0x150] sm:$0xff]
    %v107 = vld [vmem:[%s2 + $0x158] sm:$0xff]
    %v108 = vld [vmem:[%s2 + $0x160] sm:$0xff]
    %v109 = vld [vmem:[%s2 + $0x168] sm:$0xff]
    %v110 = vld [vmem:[%s2 + $0x170] sm:$0xff]
    %v111 = vld [vmem:[%s2 + $0x178] sm:$0xff]
    %v112 = vld [vmem:[%s2 + $0x180] sm:$0xff]
    %v113 = vld [vmem:[%s2 + $0x188] sm:$0xff]
    %v114 = vld [vmem:[%s2 + $0x190] sm:$0xff]
    %v115 = vld [vmem:[%s2 + $0x198] sm:$0xff]
    %v116 = vld [vmem:[%s2 + $0x1a0] sm:$0xff]
    %v117 = vld [vmem:[%s2 + $0x1a8] sm:$0xff]
    %v118 = vld [vmem:[%s2 + $0x1b0] sm:$0xff]
    %v119 = vld [vmem:[%s2 + $0x1b8] sm:$0xff]
    %v120 = vld [vmem:[%s2 + $0x1c0] sm:$0xff]
    %v121 = vld [vmem:[%s2 + $0x1c8] sm:$0xff]
    %v122 = vld [vmem:[%s2 + $0x1d0] sm:$0xff]
    %v123 = vld [vmem:[%s2 + $0x1d8] sm:$0xff]
    %v124 = vld [vmem:[%s2 + $0x1e0] sm:$0xff]
    %v125 = vld [vmem:[%s2 + $0x1e8] sm:$0xff]
    %v126 = vld [vmem:[%s2 + $0x1f0] sm:$0xff]
    %v127 = vld [vmem:[%s2 + $0x1f8] sm:$0xff]
    %v128 = vld [vmem:[%s2 + $0x200] sm:$0xff]
    %v129 = vld [vmem:[%s2 + $0x208] sm:$0xff]
    %v130 = vld [vmem:[%s2 + $0x210] sm:$0xff]
    %v131 = vld [vmem:[%s2 + $0x218] sm:$0xff]
    %v132 = vld [vmem:[%s2 + $0x220] sm:$0xff]
    %v133 = vld [vmem:[%s2 + $0x228] sm:$0xff]
    %v134 = vld [vmem:[%s2 + $0x230] sm:$0xff]
    %v135 = vld [vmem:[%s2 + $0x238] sm:$0xff]
    %v136 = vld [vmem:[%s2 + $0x240] sm:$0xff]
    %v137 = vld [vmem:[%s2 + $0x248] sm:$0xff]
    %v138 = vld [vmem:[%s2 + $0x250] sm:$0xff]
    %v139 = vld [vmem:[%s2 + $0x258] sm:$0xff]
    %v140 = vld [vmem:[%s2 + $0x260] sm:$0xff]
    %v141 = vld [vmem:[%s2 + $0x268] sm:$0xff]
    %v142 = vld [vmem:[%s2 + $0x270] sm:$0xff]
    %v143 = vld [vmem:[%s2 + $0x278] sm:$0xff]
    %v144 = vld [vmem:[%s2 + $0x280] sm:$0xff]
    %v145 = vld [vmem:[%s2 + $0x288] sm:$0xff]
    %v146 = vld [vmem:[%s2 + $0x290] sm:$0xff]
    %v147 = vld [vmem:[%s2 + $0x298] sm:$0xff]
    %v148 = vld [vmem:[%s2 + $0x2a0] sm:$0xff]
    %v149 = vld [vmem:[%s2 + $0x2a8] sm:$0xff]
    %v150 = vld [vmem:[%s2 + $0x2b0] sm:$0xff]
    %v151 = vld [vmem:[%s2 + $0x2b8] sm:$0xff]
    %v152 = vld [vmem:[%s2 + $0x2c0] sm:$0xff]
    %v153 = vld [vmem:[%s2 + $0x2c8] sm:$0xff]
    %v154 = vld [vmem:[%s2 + $0x2d0] sm:$0xff]
    %v155 = vld [vmem:[%s2 + $0x2d8] sm:$0xff]
    %v156 = vld [vmem:[%s2 + $0x2e0] sm:$0xff]
    %v157 = vld [vmem:[%s2 + $0x2e8] sm:$0xff]
    %v158 = vld [vmem:[%s2 + $0x2f0] sm:$0xff]
    %v159 = vld [vmem:[%s2 + $0x2f8] sm:$0xff]
    %v160 = vld [vmem:[%s2 + $0x300] sm:$0xff]
    %v161 = vld [vmem:[%s2 + $0x308] sm:$0xff]
    %v162 = vld [vmem:[%s2 + $0x310] sm:$0xff]
    %v163 = vld [vmem:[%s2 + $0x318] sm:$0xff]
    %v164 = vld [vmem:[%s2 + $0x320] sm:$0xff]
    %v165 = vld [vmem:[%s2 + $0x328] sm:$0xff]
    %v166 = vld [vmem:[%s2 + $0x330] sm:$0xff]
    %v167 = vld [vmem:[%s2 + $0x338] sm:$0xff]
    %v168 = vld [vmem:[%s2 + $0x340] sm:$0xff]
    %v169 = vld [vmem:[%s2 + $0x348] sm:$0xff]
    %v170 = vld [vmem:[%s2 + $0x350] sm:$0xff]
    %v171 = vld [vmem:[%s2 + $0x358] sm:$0xff]
    %v172 = vld [vmem:[%s2 + $0x360] sm:$0xff]
    %v173 = vld [vmem:[%s2 + $0x368] sm:$0xff]
    %v174 = vld [vmem:[%s2 + $0x370] sm:$0xff]
    %v175 = vld [vmem:[%s2 + $0x378] sm:$0xff]
    %v176 = vld [vmem:[%s2 + $0x380] sm:$0xff]
    %v177 = vld [vmem:[%s2 + $0x388] sm:$0xff]
    %v178 = vld [vmem:[%s2 + $0x390] sm:$0xff]
    %v179 = vld [vmem:[%s2 + $0x398] sm:$0xff]
    %v180 = vld [vmem:[%s2 + $0x3a0] sm:$0xff]
    %v181 = vld [vmem:[%s2 + $0x3a8] sm:$0xff]
    %v182 = vld [vmem:[%s2 + $0x3b0] sm:$0xff]
    %v183 = vld [vmem:[%s2 + $0x3b8] sm:$0xff]
    %v184 = vld [vmem:[%s2 + $0x3c0] sm:$0xff]
    %v185 = vld [vmem:[%s2 + $0x3c8] sm:$0xff]
    %v186 = vld [vmem:[%s2 + $0x3d0] sm:$0xff]
    %v187 = vld [vmem:[%s2 + $0x3d8] sm:$0xff]
    %v188 = vld [vmem:[%s2 + $0x3e0] sm:$0xff]
    %v189 = vld [vmem:[%s2 + $0x3e8] sm:$0xff]
    %v190 = vld [vmem:[%s2 + $0x3f0] sm:$0xff]
    %v191 = vld [vmem:[%s2 + $0x3f8] sm:$0xff]
    %v192 = vld [vmem:[%s2 + $0x400] sm:$0xff]
    %v193 = vld [vmem:[%s2 + $0x408] sm:$0xff]
    %v194 = vld [vmem:[%s2 + $0x410] sm:$0xff]
    %v195 = vld [vmem:[%s2 + $0x418] sm:$0xff]
    %v196 = vld [vmem:[%s2 + $0x420] sm:$0xff]
    %v197 = vld [vmem:[%s2 + $0x428] sm:$0xff]
    %v198 = vld [vmem:[%s2 + $0x430] sm:$0xff]
    %v199 = vld [vmem:[%s2 + $0x438] sm:$0xff]
    %v200 = vld [vmem:[%s2 + $0x440] sm:$0xff]
    %v201 = vld [vmem:[%s2 + $0x448] sm:$0xff]
    %v202 = vld [vmem:[%s2 + $0x450] sm:$0xff]
    %v203 = vld [vmem:[%s2 + $0x458] sm:$0xff]
    %v204 = vld [vmem:[%s2 + $0x460] sm:$0xff]
    %v205 = vld [vmem:[%s2 + $0x468] sm:$0xff]
    %v206 = vld [vmem:[%s2 + $0x470] sm:$0xff]
    %v207 = vld [vmem:[%s2 + $0x478] sm:$0xff]
    %v208 = vld [vmem:[%s2 + $0x480] sm:$0xff]
    %v209 = vld [vmem:[%s2 + $0x488] sm:$0xff]
    %v210 = vld [vmem:[%s2 + $0x490] sm:$0xff]
    %v211 = vld [vmem:[%s2 + $0x498] sm:$0xff]
    %v212 = vld [vmem:[%s2 + $0x4a0] sm:$0xff]
    %v213 = vld [vmem:[%s2 + $0x4a8] sm:$0xff]
    %v214 = vld [vmem:[%s2 + $0x4b0] sm:$0xff]
    %v215 = vld [vmem:[%s2 + $0x4b8] sm:$0xff]
    %v216 = vld [vmem:[%s2 + $0x4c0] sm:$0xff]
    %v217 = vld [vmem:[%s2 + $0x4c8] sm:$0xff]
    %v218 = vld [vmem:[%s2 + $0x4d0] sm:$0xff]
    %v219 = vld [vmem:[%s2 + $0x4d8] sm:$0xff]
    %v220 = vld [vmem:[%s2 + $0x4e0] sm:$0xff]
    %v221 = vld [vmem:[%s2 + $0x4e8] sm:$0xff]
    %v222 = vld [vmem:[%s2 + $0x4f0] sm:$0xff]
    %v223 = vld [vmem:[%s2 + $0x4f8] sm:$0xff]
    %v224 = vld [vmem:[%s2 + $0x500] sm:$0xff]
    %v225 = vld [vmem:[%s2 + $0x508] sm:$0xff]
    %v226 = vld [vmem:[%s2 + $0x510] sm:$0xff]
    %v227 = vld [vmem:[%s2 + $0x518] sm:$0xff]
    %v228 = vld [vmem:[%s2 + $0x520] sm:$0xff]
    %v229 = vld [vmem:[%s2 + $0x528] sm:$0xff]
    %v230 = vld [vmem:[%s2 + $0x530] sm:$0xff]
    %v231 = vld [vmem:[%s2 + $0x538] sm:$0xff]
    %v232 = vld [vmem:[%s2 + $0x540] sm:$0xff]
    %v233 = vld [vmem:[%s2 + $0x548] sm:$0xff]
    %v234 = vld [vmem:[%s2 + $0x550] sm:$0xff]
    %v235 = vld [vmem:[%s2 + $0x558] sm:$0xff]
    %v236 = vld [vmem:[%s2 + $0x560] sm:$0xff]
    %v237 = vld [vmem:[%s2 + $0x568] sm:$0xff]
    %v238 = vld [vmem:[%s2 + $0x570] sm:$0xff]
    %v239 = vld [vmem:[%s2 + $0x578] sm:$0xff]
    %v240 = vld [vmem:[%s2 + $0x580] sm:$0xff]
    %v241 = vld [vmem:[%s2 + $0x588] sm:$0xff]
    %v242 = vld [vmem:[%s2 + $0x590] sm:$0xff]
    %v243 = vld [vmem:[%s2 + $0x598] sm:$0xff]
    %v244 = vld [vmem:[%s2 + $0x5a0] sm:$0xff]
    %v245 = vld [vmem:[%s2 + $0x5a8] sm:$0xff]
    %v246 = vld [vmem:[%s2 + $0x5b0] sm:$0xff]
    %v247 = vld [vmem:[%s2 + $0x5b8] sm:$0xff]
    %v248 = vld [vmem:[%s2 + $0x5c0] sm:$0xff]
    %v249 = vld [vmem:[%s2 + $0x5c8] sm:$0xff]
    %v250 = vld [vmem:[%s2 + $0x5d0] sm:$0xff]
    %v251 = vld [vmem:[%s2 + $0x5d8] sm:$0xff]
    %v252 = vld [vmem:[%s2 + $0x5e0] sm:$0xff]
    %v253 = vld [vmem:[%s2 + $0x5e8] sm:$0xff]
    %v254 = vld [vmem:[%s2 + $0x5f0] sm:$0xff]
    %v255 = vld [vmem:[%s2 + $0x5f8] sm:$0xff]
    %v256 = vld [vmem:[%s2 + $0x600] sm:$0xff]
    %v257 = vld [vmem:[%s2 + $0x608] sm:$0xff]
    %v258 = vld [vmem:[%s2 + $0x610] sm:$0xff]
    %v259 = vld [vmem:[%s2 + $0x618] sm:$0xff]
    %v260 = vld [vmem:[%s3] sm:$0x3]
    %v262 = vperm.slane %v260, 0
    %v263 = vperm.slane %v260, 1
    %vm266 = vcmask 130048
    %v268 = vsel %vm266, %v63, 0
    %270 = vmatpush.msra.mxu0 %v94
    %271 = vmatpush.msra.mxu0 %v92
    %272 = vmatpush.msra.mxu0 %v90
    %273 = vmatpush.msra.mxu0 %v88
    %274 = vmatpush.msra.mxu0 %v86
    %275 = vmatpush.msra.mxu0 %v84
    %276 = vmatpush.msra.mxu0 %v82
    %277 = vmatpush.msra.mxu0 %v80
    %278 = vmatpush.msra.mxu0 %v78
    %279 = vmatpush.msra.mxu0 %v76
    %280 = vmatpush.msra.mxu0 %v74
    %281 = vmatpush.msra.mxu0 %v72
    %282 = vmatpush.msra.mxu0 %v70
    %283 = vmatpush.msra.mxu0 %v68
    %284 = vmatpush.msra.mxu0 %v66
    %285 = vmatpush.msra.mxu0 %v64
    %286 = vmatmul.f32.gmra.mxu0 %v57
    %v287 = vpop.f32.mrf.mxu0
    %v288 = vadd.f32 %v262, %v287
    %289 = vdwg.mxu0
    %290 = vmatpush.msra.mxu0 %v126
    %291 = vmatpush.msra.mxu0 %v124
    %292 = vmatpush.msra.mxu0 %v122
    %293 = vmatpush.msra.mxu0 %v120
    %294 = vmatpush.msra.mxu0 %v118
    %295 = vmatpush.msra.mxu0 %v116
    %296 = vmatpush.msra.mxu0 %v114
    %297 = vmatpush.msra.mxu0 %v112
    %298 = vmatpush.msra.mxu0 %v110
    %299 = vmatpush.msra.mxu0 %v108
    %300 = vmatpush.msra.mxu0 %v106
    %301 = vmatpush.msra.mxu0 %v104
    %302 = vmatpush.msra.mxu0 %v102
    %303 = vmatpush.msra.mxu0 %v100
    %304 = vmatpush.msra.mxu0 %v98
    %305 = vmatpush.msra.mxu0 %v96
    %306 = vmatmul.f32.gmra.mxu0 %v58
    %v307 = vpop.f32.mrf.mxu0
    %v308 = vadd.f32 %v288, %v307
    %309 = vdwg.mxu0
    %310 = vmatpush.msra.mxu0 %v158
    %311 = vmatpush.msra.mxu0 %v156
    %312 = vmatpush.msra.mxu0 %v154
    %313 = vmatpush.msra.mxu0 %v152
    %314 = vmatpush.msra.mxu0 %v150
    %315 = vmatpush.msra.mxu0 %v148
    %316 = vmatpush.msra.mxu0 %v146
    %317 = vmatpush.msra.mxu0 %v144
    %318 = vmatpush.msra.mxu0 %v142
    %319 = vmatpush.msra.mxu0 %v140
    %320 = vmatpush.msra.mxu0 %v138
    %321 = vmatpush.msra.mxu0 %v136
    %322 = vmatpush.msra.mxu0 %v134
    %323 = vmatpush.msra.mxu0 %v132
    %324 = vmatpush.msra.mxu0 %v130
    %325 = vmatpush.msra.mxu0 %v128
    %326 = vmatmul.f32.gmra.mxu0 %v59
    %v327 = vpop.f32.mrf.mxu0
    %v328 = vadd.f32 %v308, %v327
    %329 = vdwg.mxu0
    %330 = vmatpush.msra.mxu0 %v190
    %331 = vmatpush.msra.mxu0 %v188
    %332 = vmatpush.msra.mxu0 %v186
    %333 = vmatpush.msra.mxu0 %v184
    %334 = vmatpush.msra.mxu0 %v182
    %335 = vmatpush.msra.mxu0 %v180
    %336 = vmatpush.msra.mxu0 %v178
    %337 = vmatpush.msra.mxu0 %v176
    %338 = vmatpush.msra.mxu0 %v174
    %339 = vmatpush.msra.mxu0 %v172
    %340 = vmatpush.msra.mxu0 %v170
    %341 = vmatpush.msra.mxu0 %v168
    %342 = vmatpush.msra.mxu0 %v166
    %343 = vmatpush.msra.mxu0 %v164
    %344 = vmatpush.msra.mxu0 %v162
    %345 = vmatpush.msra.mxu0 %v160
    %346 = vmatmul.f32.gmra.mxu0 %v60
    %v347 = vpop.f32.mrf.mxu0
    %v348 = vadd.f32 %v328, %v347
    %349 = vdwg.mxu0
    %350 = vmatpush.msra.mxu0 %v222
    %351 = vmatpush.msra.mxu0 %v220
    %352 = vmatpush.msra.mxu0 %v218
    %353 = vmatpush.msra.mxu0 %v216
    %354 = vmatpush.msra.mxu0 %v214
    %355 = vmatpush.msra.mxu0 %v212
    %356 = vmatpush.msra.mxu0 %v210
    %357 = vmatpush.msra.mxu0 %v208
    %358 = vmatpush.msra.mxu0 %v206
    %359 = vmatpush.msra.mxu0 %v204
    %360 = vmatpush.msra.mxu0 %v202
    %361 = vmatpush.msra.mxu0 %v200
    %362 = vmatpush.msra.mxu0 %v198
    %363 = vmatpush.msra.mxu0 %v196
    %364 = vmatpush.msra.mxu0 %v194
    %365 = vmatpush.msra.mxu0 %v192
    %366 = vmatmul.f32.gmra.mxu0 %v61
    %v367 = vpop.f32.mrf.mxu0
    %v368 = vadd.f32 %v348, %v367
    %369 = vdwg.mxu0
    %370 = vmatpush.msra.mxu0 %v254
    %371 = vmatpush.msra.mxu0 %v252
    %372 = vmatpush.msra.mxu0 %v250
    %373 = vmatpush.msra.mxu0 %v248
    %374 = vmatpush.msra.mxu0 %v246
    %375 = vmatpush.msra.mxu0 %v244
    %376 = vmatpush.msra.mxu0 %v242
    %377 = vmatpush.msra.mxu0 %v240
    %378 = vmatpush.msra.mxu0 %v238
    %379 = vmatpush.msra.mxu0 %v236
    %380 = vmatpush.msra.mxu0 %v234
    %381 = vmatpush.msra.mxu0 %v232
    %382 = vmatpush.msra.mxu0 %v230
    %383 = vmatpush.msra.mxu0 %v228
    %384 = vmatpush.msra.mxu0 %v226
    %385 = vmatpush.msra.mxu0 %v224
    %386 = vmatmul.f32.gmra.mxu0 %v62
    %v387 = vpop.f32.mrf.mxu0
    %v388 = vadd.f32 %v368, %v387
    %389 = vdwg.mxu0
    %390 = vmatpush.msra.mxu0 0.0
    %391 = vmatpush.msra.mxu0 0.0
    %392 = vmatpush.msra.mxu0 0.0
    %393 = vmatpush.msra.mxu0 0.0
    %394 = vmatpush.msra.mxu0 0.0
    %395 = vmatpush.msra.mxu0 0.0
    %396 = vmatpush.msra.mxu0 0.0
    %397 = vmatpush.msra.mxu0 0.0
    %398 = vmatpush.msra.mxu0 0.0
    %399 = vmatpush.msra.mxu0 0.0
    %400 = vmatpush.msra.mxu0 0.0
    %401 = vmatpush.msra.mxu0 0.0
    %402 = vmatpush.msra.mxu0 0.0
    %403 = vmatpush.msra.mxu0 0.0
    %404 = vmatpush.msra.mxu0 %v258
    %405 = vmatpush.msra.mxu0 %v256
    %406 = vmatmul.f32.gmra.mxu0 %v268
    %v407 = vpop.f32.mrf.mxu0
    %v408 = vadd.f32 %v388, %v407
    %409 = vdwg.mxu0
    %410 = vmatpush.msra.mxu0 %v95
    %411 = vmatpush.msra.mxu0 %v93
    %412 = vmatpush.msra.mxu0 %v91
    %413 = vmatpush.msra.mxu0 %v89
    %414 = vmatpush.msra.mxu0 %v87
    %415 = vmatpush.msra.mxu0 %v85
    %416 = vmatpush.msra.mxu0 %v83
    %417 = vmatpush.msra.mxu0 %v81
    %418 = vmatpush.msra.mxu0 %v79
    %419 = vmatpush.msra.mxu0 %v77
    %420 = vmatpush.msra.mxu0 %v75
    %421 = vmatpush.msra.mxu0 %v73
    %422 = vmatpush.msra.mxu0 %v71
    %423 = vmatpush.msra.mxu0 %v69
    %424 = vmatpush.msra.mxu0 %v67
    %425 = vmatpush.msra.mxu0 %v65
    %426 = vmatmul.f32.gmra.mxu0 %v57
    %v427 = vpop.f32.mrf.mxu0
    %v428 = vadd.f32 %v263, %v427
    %429 = vdwg.mxu0
    %430 = vmatpush.msra.mxu0 %v127
    %431 = vmatpush.msra.mxu0 %v125
    %432 = vmatpush.msra.mxu0 %v123
    %433 = vmatpush.msra.mxu0 %v121
    %434 = vmatpush.msra.mxu0 %v119
    %435 = vmatpush.msra.mxu0 %v117
    %436 = vmatpush.msra.mxu0 %v115
    %437 = vmatpush.msra.mxu0 %v113
    %438 = vmatpush.msra.mxu0 %v111
    %439 = vmatpush.msra.mxu0 %v109
    %440 = vmatpush.msra.mxu0 %v107
    %441 = vmatpush.msra.mxu0 %v105
    %442 = vmatpush.msra.mxu0 %v103
    %443 = vmatpush.msra.mxu0 %v101
    %444 = vmatpush.msra.mxu0 %v99
    %445 = vmatpush.msra.mxu0 %v97
    %446 = vmatmul.f32.gmra.mxu0 %v58
    %v447 = vpop.f32.mrf.mxu0
    %v448 = vadd.f32 %v428, %v447
    %449 = vdwg.mxu0
    %450 = vmatpush.msra.mxu0 %v159
    %451 = vmatpush.msra.mxu0 %v157
    %452 = vmatpush.msra.mxu0 %v155
    %453 = vmatpush.msra.mxu0 %v153
    %454 = vmatpush.msra.mxu0 %v151
    %455 = vmatpush.msra.mxu0 %v149
    %456 = vmatpush.msra.mxu0 %v147
    %457 = vmatpush.msra.mxu0 %v145
    %458 = vmatpush.msra.mxu0 %v143
    %459 = vmatpush.msra.mxu0 %v141
    %460 = vmatpush.msra.mxu0 %v139
    %461 = vmatpush.msra.mxu0 %v137
    %462 = vmatpush.msra.mxu0 %v135
    %463 = vmatpush.msra.mxu0 %v133
    %464 = vmatpush.msra.mxu0 %v131
    %465 = vmatpush.msra.mxu0 %v129
    %466 = vmatmul.f32.gmra.mxu0 %v59
    %v467 = vpop.f32.mrf.mxu0
    %v468 = vadd.f32 %v448, %v467
    %469 = vdwg.mxu0
    %470 = vmatpush.msra.mxu0 %v191
    %471 = vmatpush.msra.mxu0 %v189
    %472 = vmatpush.msra.mxu0 %v187
    %473 = vmatpush.msra.mxu0 %v185
    %474 = vmatpush.msra.mxu0 %v183
    %475 = vmatpush.msra.mxu0 %v181
    %476 = vmatpush.msra.mxu0 %v179
    %477 = vmatpush.msra.mxu0 %v177
    %478 = vmatpush.msra.mxu0 %v175
    %479 = vmatpush.msra.mxu0 %v173
    %480 = vmatpush.msra.mxu0 %v171
    %481 = vmatpush.msra.mxu0 %v169
    %482 = vmatpush.msra.mxu0 %v167
    %483 = vmatpush.msra.mxu0 %v165
    %484 = vmatpush.msra.mxu0 %v163
    %485 = vmatpush.msra.mxu0 %v161
    %486 = vmatmul.f32.gmra.mxu0 %v60
    %v487 = vpop.f32.mrf.mxu0
    %v488 = vadd.f32 %v468, %v487
    %489 = vdwg.mxu0
    %490 = vmatpush.msra.mxu0 %v223
    %491 = vmatpush.msra.mxu0 %v221
    %492 = vmatpush.msra.mxu0 %v219
    %493 = vmatpush.msra.mxu0 %v217
    %494 = vmatpush.msra.mxu0 %v215
    %495 = vmatpush.msra.mxu0 %v213
    %496 = vmatpush.msra.mxu0 %v211
    %497 = vmatpush.msra.mxu0 %v209
    %498 = vmatpush.msra.mxu0 %v207
    %499 = vmatpush.msra.mxu0 %v205
    %500 = vmatpush.msra.mxu0 %v203
    %501 = vmatpush.msra.mxu0 %v201
    %502 = vmatpush.msra.mxu0 %v199
    %503 = vmatpush.msra.mxu0 %v197
    %504 = vmatpush.msra.mxu0 %v195
    %505 = vmatpush.msra.mxu0 %v193
    %506 = vmatmul.f32.gmra.mxu0 %v61
    %v507 = vpop.f32.mrf.mxu0
    %v508 = vadd.f32 %v488, %v507
    %509 = vdwg.mxu0
    %510 = vmatpush.msra.mxu0 %v255
    %511 = vmatpush.msra.mxu0 %v253
    %512 = vmatpush.msra.mxu0 %v251
    %513 = vmatpush.msra.mxu0 %v249
    %514 = vmatpush.msra.mxu0 %v247
    %515 = vmatpush.msra.mxu0 %v245
    %516 = vmatpush.msra.mxu0 %v243
    %517 = vmatpush.msra.mxu0 %v241
    %518 = vmatpush.msra.mxu0 %v239
    %519 = vmatpush.msra.mxu0 %v237
    %520 = vmatpush.msra.mxu0 %v235
    %521 = vmatpush.msra.mxu0 %v233
    %522 = vmatpush.msra.mxu0 %v231
    %523 = vmatpush.msra.mxu0 %v229
    %524 = vmatpush.msra.mxu0 %v227
    %525 = vmatpush.msra.mxu0 %v225
    %526 = vmatmul.f32.gmra.mxu0 %v62
    %v527 = vpop.f32.mrf.mxu0
    %v528 = vadd.f32 %v508, %v527
    %529 = vdwg.mxu0
    %530 = vmatpush.msra.mxu0 0.0
    %531 = vmatpush.msra.mxu0 0.0
    %532 = vmatpush.msra.mxu0 0.0
    %533 = vmatpush.msra.mxu0 0.0
    %534 = vmatpush.msra.mxu0 0.0
    %535 = vmatpush.msra.mxu0 0.0
    %536 = vmatpush.msra.mxu0 0.0
    %537 = vmatpush.msra.mxu0 0.0
    %538 = vmatpush.msra.mxu0 0.0
    %539 = vmatpush.msra.mxu0 0.0
    %540 = vmatpush.msra.mxu0 0.0
    %541 = vmatpush.msra.mxu0 0.0
    %542 = vmatpush.msra.mxu0 0.0
    %543 = vmatpush.msra.mxu0 0.0
    %544 = vmatpush.msra.mxu0 %v259
    %545 = vmatpush.msra.mxu0 %v257
    %546 = vmatmul.f32.gmra.mxu0 %v268
    %v547 = vpop.f32.mrf.mxu0
    %v548 = vadd.f32 %v528, %v547
    %549 = vdwg.mxu0
    %v550 = vmax.f32 %v408, 0.0
    %v551 = vmax.f32 %v548, 0.0
    %v552 = vmul.u32 %v55, 2654435761
    %v553 = vmul.u32 %v56, 2654435761
    %s554 = smul.u32 %s45, 2246822519
    %v555 = vstv %s554
    %v556 = vadd.s32 %v552, %v555
    %v557 = vadd.s32 %v553, %v555
    %v558 = vxor.u32 %v556, 1013904242
    %v559 = vxor.u32 %v557, 1013904242
    %v560 = vshrl.u32 %v558, 16
    %v561 = vshrl.u32 %v559, 16
    %v562 = vxor.u32 %v558, %v560
    %v563 = vxor.u32 %v559, %v561
    %v564 = vmul.u32 %v562, 2146121005
    %v565 = vmul.u32 %v563, 2146121005
    %v566 = vshrl.u32 %v564, 15
    %v567 = vshrl.u32 %v565, 15
    %v568 = vxor.u32 %v564, %v566
    %v569 = vxor.u32 %v565, %v567
    %v570 = vmul.u32 %v568, 2221713035
    %v571 = vmul.u32 %v569, 2221713035
    %v572 = vshrl.u32 %v570, 16
    %v573 = vshrl.u32 %v571, 16
    %v574 = vxor.u32 %v570, %v572
    %v575 = vxor.u32 %v571, %v573
    %v576 = vstv %s45
    %v577 = vxor.u32 %v574, %v576
    %v578 = vxor.u32 %v575, %v576
    %v579 = vshrl.u32 %v577, 16
    %v580 = vshrl.u32 %v578, 16
    %v581 = vxor.u32 %v577, %v579
    %v582 = vxor.u32 %v578, %v580
    %v583 = vmul.u32 %v581, 2146121005
    %v584 = vmul.u32 %v582, 2146121005
    %v585 = vshrl.u32 %v583, 15
    %v586 = vshrl.u32 %v584, 15
    %v587 = vxor.u32 %v583, %v585
    %v588 = vxor.u32 %v584, %v586
    %v589 = vmul.u32 %v587, 2221713035
    %v590 = vmul.u32 %v588, 2221713035
    %v591 = vshrl.u32 %v589, 16
    %v592 = vshrl.u32 %v590, 16
    %v593 = vxor.u32 %v589, %v591
    %v594 = vxor.u32 %v590, %v592
    %v595 = vadd.s32 %v593, 2147483648
    %vm597 = vcmp.ge.s32.totalorder %v595, 3006477107
    %v598 = vadd.s32 %v594, 2147483648
    %vm600 = vcmp.ge.s32.totalorder %v598, 3006477107
    %v601 = vmul.f32 %v550, 1.25
    %v602 = vmul.f32 %v551, 1.25
    %v603 = vsel %vm597, %v601, 0.0
    %v604 = vsel %vm600, %v602, 0.0
    %v605 = vld [vmem:[#allocation4] sm:$0xff]
    %v606 = vld [vmem:[#allocation4 + $0x8] sm:$0xff]
    %v607 = vld [vmem:[#allocation4 + $0x10] sm:$0xff]
    %v608 = vld [vmem:[#allocation4 + $0x18] sm:$0xff]
    %v609 = vld [vmem:[#allocation4 + $0x20] sm:$0xff]
    %v610 = vld [vmem:[#allocation4 + $0x28] sm:$0xff]
    %v611 = vld [vmem:[#allocation4 + $0x30] sm:$0xff]
    %v612 = vld [vmem:[#allocation4 + $0x38] sm:$0xff]
    %v613 = vld [vmem:[#allocation4 + $0x40] sm:$0xff]
    %v614 = vld [vmem:[#allocation4 + $0x48] sm:$0xff]
    %v615 = vld [vmem:[#allocation4 + $0x50] sm:$0xff]
    %v616 = vld [vmem:[#allocation4 + $0x58] sm:$0xff]
    %v617 = vld [vmem:[#allocation4 + $0x60] sm:$0xff]
    %v618 = vld [vmem:[#allocation4 + $0x68] sm:$0xff]
    %v619 = vld [vmem:[#allocation4 + $0x70] sm:$0xff]
    %v620 = vld [vmem:[#allocation4 + $0x78] sm:$0xff]
    %v621 = vld [vmem:[#allocation4 + $0x80] sm:$0xff]
    %v622 = vld [vmem:[#allocation4 + $0x88] sm:$0xff]
    %v623 = vld [vmem:[#allocation4 + $0x90] sm:$0xff]
    %v624 = vld [vmem:[#allocation4 + $0x98] sm:$0xff]
    %v625 = vld [vmem:[#allocation4 + $0xa0] sm:$0xff]
    %v626 = vld [vmem:[#allocation4 + $0xa8] sm:$0xff]
    %v627 = vld [vmem:[#allocation4 + $0xb0] sm:$0xff]
    %v628 = vld [vmem:[#allocation4 + $0xb8] sm:$0xff]
    %v629 = vld [vmem:[#allocation4 + $0xc0] sm:$0xff]
    %v630 = vld [vmem:[#allocation4 + $0xc8] sm:$0xff]
    %v631 = vld [vmem:[#allocation4 + $0xd0] sm:$0xff]
    %v632 = vld [vmem:[#allocation4 + $0xd8] sm:$0xff]
    %v633 = vld [vmem:[#allocation4 + $0xe0] sm:$0xff]
    %v634 = vld [vmem:[#allocation4 + $0xe8] sm:$0xff]
    %v635 = vld [vmem:[#allocation4 + $0xf0] sm:$0xff]
    %v636 = vld [vmem:[#allocation4 + $0xf8] sm:$0xff]
    %v637 = vld [vmem:[#allocation4 + $0x100] sm:$0xff]
    %v638 = vld [vmem:[#allocation4 + $0x108] sm:$0xff]
    %v639 = vld [vmem:[#allocation4 + $0x110] sm:$0xff]
    %v640 = vld [vmem:[#allocation4 + $0x118] sm:$0xff]
    %v641 = vld [vmem:[#allocation4 + $0x120] sm:$0xff]
    %v642 = vld [vmem:[#allocation4 + $0x128] sm:$0xff]
    %v643 = vld [vmem:[#allocation4 + $0x130] sm:$0xff]
    %v644 = vld [vmem:[#allocation4 + $0x138] sm:$0xff]
    %v645 = vld [vmem:[#allocation4 + $0x140] sm:$0xff]
    %v646 = vld [vmem:[#allocation4 + $0x148] sm:$0xff]
    %v647 = vld [vmem:[#allocation4 + $0x150] sm:$0xff]
    %v648 = vld [vmem:[#allocation4 + $0x158] sm:$0xff]
    %v649 = vld [vmem:[#allocation4 + $0x160] sm:$0xff]
    %v650 = vld [vmem:[#allocation4 + $0x168] sm:$0xff]
    %v651 = vld [vmem:[#allocation4 + $0x170] sm:$0xff]
    %v652 = vld [vmem:[#allocation4 + $0x178] sm:$0xff]
    %v653 = vld [vmem:[#allocation4 + $0x180] sm:$0xff]
    %v654 = vld [vmem:[#allocation4 + $0x188] sm:$0xff]
    %v655 = vld [vmem:[#allocation4 + $0x190] sm:$0xff]
    %v656 = vld [vmem:[#allocation4 + $0x198] sm:$0xff]
    %v657 = vld [vmem:[#allocation4 + $0x1a0] sm:$0xff]
    %v658 = vld [vmem:[#allocation4 + $0x1a8] sm:$0xff]
    %v659 = vld [vmem:[#allocation4 + $0x1b0] sm:$0xff]
    %v660 = vld [vmem:[#allocation4 + $0x1b8] sm:$0xff]
    %v661 = vld [vmem:[#allocation4 + $0x1c0] sm:$0xff]
    %v662 = vld [vmem:[#allocation4 + $0x1c8] sm:$0xff]
    %v663 = vld [vmem:[#allocation4 + $0x1d0] sm:$0xff]
    %v664 = vld [vmem:[#allocation4 + $0x1d8] sm:$0xff]
    %v665 = vld [vmem:[#allocation4 + $0x1e0] sm:$0xff]
    %v666 = vld [vmem:[#allocation4 + $0x1e8] sm:$0xff]
    %v667 = vld [vmem:[#allocation4 + $0x1f0] sm:$0xff]
    %v668 = vld [vmem:[#allocation4 + $0x1f8] sm:$0xff]
    %v669 = vld [vmem:[%s5] sm:$0x3]
    %v671 = vperm.slane %v669, 0
    %v672 = vperm.slane %v669, 1
    %675 = vmatpush.msra.mxu0 %v635
    %676 = vmatpush.msra.mxu0 %v633
    %677 = vmatpush.msra.mxu0 %v631
    %678 = vmatpush.msra.mxu0 %v629
    %679 = vmatpush.msra.mxu0 %v627
    %680 = vmatpush.msra.mxu0 %v625
    %681 = vmatpush.msra.mxu0 %v623
    %682 = vmatpush.msra.mxu0 %v621
    %683 = vmatpush.msra.mxu0 %v619
    %684 = vmatpush.msra.mxu0 %v617
    %685 = vmatpush.msra.mxu0 %v615
    %686 = vmatpush.msra.mxu0 %v613
    %687 = vmatpush.msra.mxu0 %v611
    %688 = vmatpush.msra.mxu0 %v609
    %689 = vmatpush.msra.mxu0 %v607
    %690 = vmatpush.msra.mxu0 %v605
    %691 = vmatmul.f32.gmra.mxu0 %v603
    %v692 = vpop.f32.mrf.mxu0
    %v693 = vadd.f32 %v671, %v692
    %694 = vdwg.mxu0
    %695 = vmatpush.msra.mxu0 %v667
    %696 = vmatpush.msra.mxu0 %v665
    %697 = vmatpush.msra.mxu0 %v663
    %698 = vmatpush.msra.mxu0 %v661
    %699 = vmatpush.msra.mxu0 %v659
    %700 = vmatpush.msra.mxu0 %v657
    %701 = vmatpush.msra.mxu0 %v655
    %702 = vmatpush.msra.mxu0 %v653
    %703 = vmatpush.msra.mxu0 %v651
    %704 = vmatpush.msra.mxu0 %v649
    %705 = vmatpush.msra.mxu0 %v647
    %706 = vmatpush.msra.mxu0 %v645
    %707 = vmatpush.msra.mxu0 %v643
    %708 = vmatpush.msra.mxu0 %v641
    %709 = vmatpush.msra.mxu0 %v639
    %710 = vmatpush.msra.mxu0 %v637
    %711 = vmatmul.f32.gmra.mxu0 %v604
    %v712 = vpop.f32.mrf.mxu0
    %v713 = vadd.f32 %v693, %v712
    %714 = vdwg.mxu0
    %715 = vmatpush.msra.mxu0 %v636
    %716 = vmatpush.msra.mxu0 %v634
    %717 = vmatpush.msra.mxu0 %v632
    %718 = vmatpush.msra.mxu0 %v630
    %719 = vmatpush.msra.mxu0 %v628
    %720 = vmatpush.msra.mxu0 %v626
    %721 = vmatpush.msra.mxu0 %v624
    %722 = vmatpush.msra.mxu0 %v622
    %723 = vmatpush.msra.mxu0 %v620
    %724 = vmatpush.msra.mxu0 %v618
    %725 = vmatpush.msra.mxu0 %v616
    %726 = vmatpush.msra.mxu0 %v614
    %727 = vmatpush.msra.mxu0 %v612
    %728 = vmatpush.msra.mxu0 %v610
    %729 = vmatpush.msra.mxu0 %v608
    %730 = vmatpush.msra.mxu0 %v606
    %731 = vmatmul.f32.gmra.mxu0 %v603
    %v732 = vpop.f32.mrf.mxu0
    %v733 = vadd.f32 %v672, %v732
    %734 = vdwg.mxu0
    %735 = vmatpush.msra.mxu0 %v668
    %736 = vmatpush.msra.mxu0 %v666
    %737 = vmatpush.msra.mxu0 %v664
    %738 = vmatpush.msra.mxu0 %v662
    %739 = vmatpush.msra.mxu0 %v660
    %740 = vmatpush.msra.mxu0 %v658
    %741 = vmatpush.msra.mxu0 %v656
    %742 = vmatpush.msra.mxu0 %v654
    %743 = vmatpush.msra.mxu0 %v652
    %744 = vmatpush.msra.mxu0 %v650
    %745 = vmatpush.msra.mxu0 %v648
    %746 = vmatpush.msra.mxu0 %v646
    %747 = vmatpush.msra.mxu0 %v644
    %748 = vmatpush.msra.mxu0 %v642
    %749 = vmatpush.msra.mxu0 %v640
    %750 = vmatpush.msra.mxu0 %v638
    %751 = vmatmul.f32.gmra.mxu0 %v604
    %v752 = vpop.f32.mrf.mxu0
    %v753 = vadd.f32 %v733, %v752
    %754 = vdwg.mxu0
    %v755 = vmax.f32 %v713, 0.0
    %v756 = vmax.f32 %v753, 0.0
    %v757 = vxor.u32 %v556, 2773480762
    %v758 = vxor.u32 %v557, 2773480762
    %v759 = vshrl.u32 %v757, 16
    %v760 = vshrl.u32 %v758, 16
    %v761 = vxor.u32 %v757, %v759
    %v762 = vxor.u32 %v758, %v760
    %v763 = vmul.u32 %v761, 2146121005
    %v764 = vmul.u32 %v762, 2146121005
    %v765 = vshrl.u32 %v763, 15
    %v766 = vshrl.u32 %v764, 15
    %v767 = vxor.u32 %v763, %v765
    %v768 = vxor.u32 %v764, %v766
    %v769 = vmul.u32 %v767, 2221713035
    %v770 = vmul.u32 %v768, 2221713035
    %v771 = vshrl.u32 %v769, 16
    %v772 = vshrl.u32 %v770, 16
    %v773 = vxor.u32 %v769, %v771
    %v774 = vxor.u32 %v770, %v772
    %v775 = vxor.u32 %v773, %v576
    %v776 = vxor.u32 %v774, %v576
    %v777 = vshrl.u32 %v775, 16
    %v778 = vshrl.u32 %v776, 16
    %v779 = vxor.u32 %v775, %v777
    %v780 = vxor.u32 %v776, %v778
    %v781 = vmul.u32 %v779, 2146121005
    %v782 = vmul.u32 %v780, 2146121005
    %v783 = vshrl.u32 %v781, 15
    %v784 = vshrl.u32 %v782, 15
    %v785 = vxor.u32 %v781, %v783
    %v786 = vxor.u32 %v782, %v784
    %v787 = vmul.u32 %v785, 2221713035
    %v788 = vmul.u32 %v786, 2221713035
    %v789 = vshrl.u32 %v787, 16
    %v790 = vshrl.u32 %v788, 16
    %v791 = vxor.u32 %v787, %v789
    %v792 = vxor.u32 %v788, %v790
    %v793 = vadd.s32 %v791, 2147483648
    %vm795 = vcmp.ge.s32.totalorder %v793, 0
    %v796 = vadd.s32 %v792, 2147483648
    %vm798 = vcmp.ge.s32.totalorder %v796, 0
    %v799 = vmul.f32 %v755, 2.0
    %v800 = vmul.f32 %v756, 2.0
    %v801 = vsel %vm795, %v799, 0.0
    %v802 = vsel %vm798, %v800, 0.0
    %v803 = vld [vmem:[%s6] sm:$0xff]
    %v804 = vld [vmem:[%s6 + $0x8] sm:$0xff]
    %v805 = vld [vmem:[%s6 + $0x10] sm:$0xff]
    %v806 = vld [vmem:[%s6 + $0x18] sm:$0xff]
    %v807 = vld [vmem:[%s6 + $0x20] sm:$0xff]
    %v808 = vld [vmem:[%s6 + $0x28] sm:$0xff]
    %v809 = vld [vmem:[%s6 + $0x30] sm:$0xff]
    %v810 = vld [vmem:[%s6 + $0x38] sm:$0xff]
    %v811 = vld [vmem:[%s6 + $0x40] sm:$0xff]
    %v812 = vld [vmem:[%s6 + $0x48] sm:$0xff]
    %v813 = vld [vmem:[%s6 + $0x50] sm:$0xff]
    %v814 = vld [vmem:[%s6 + $0x58] sm:$0xff]
    %v815 = vld [vmem:[%s6 + $0x60] sm:$0xff]
    %v816 = vld [vmem:[%s6 + $0x68] sm:$0xff]
    %v817 = vld [vmem:[%s6 + $0x70] sm:$0xff]
    %v818 = vld [vmem:[%s6 + $0x78] sm:$0xff]
    %v819 = vld [vmem:[%s6 + $0x80] sm:$0xff]
    %v820 = vld [vmem:[%s6 + $0x88] sm:$0xff]
    %v821 = vld [vmem:[%s6 + $0x90] sm:$0xff]
    %v822 = vld [vmem:[%s6 + $0x98] sm:$0xff]
    %v823 = vld [vmem:[%s6 + $0xa0] sm:$0xff]
    %v824 = vld [vmem:[%s6 + $0xa8] sm:$0xff]
    %v825 = vld [vmem:[%s6 + $0xb0] sm:$0xff]
    %v826 = vld [vmem:[%s6 + $0xb8] sm:$0xff]
    %v827 = vld [vmem:[%s6 + $0xc0] sm:$0xff]
    %v828 = vld [vmem:[%s6 + $0xc8] sm:$0xff]
    %v829 = vld [vmem:[%s6 + $0xd0] sm:$0xff]
    %v830 = vld [vmem:[%s6 + $0xd8] sm:$0xff]
    %v831 = vld [vmem:[%s6 + $0xe0] sm:$0xff]
    %v832 = vld [vmem:[%s6 + $0xe8] sm:$0xff]
    %v833 = vld [vmem:[%s6 + $0xf0] sm:$0xff]
    %v834 = vld [vmem:[%s6 + $0xf8] sm:$0xff]
    %v835 = vld [vmem:[%s7] sm:$0x1]
    %v837 = vperm.slane %v835, 0
    %839 = vmatpush.msra.mxu0 %v818
    %840 = vmatpush.msra.mxu0 %v817
    %841 = vmatpush.msra.mxu0 %v816
    %842 = vmatpush.msra.mxu0 %v815
    %843 = vmatpush.msra.mxu0 %v814
    %844 = vmatpush.msra.mxu0 %v813
    %845 = vmatpush.msra.mxu0 %v812
    %846 = vmatpush.msra.mxu0 %v811
    %847 = vmatpush.msra.mxu0 %v810
    %848 = vmatpush.msra.mxu0 %v809
    %849 = vmatpush.msra.mxu0 %v808
    %850 = vmatpush.msra.mxu0 %v807
    %851 = vmatpush.msra.mxu0 %v806
    %852 = vmatpush.msra.mxu0 %v805
    %853 = vmatpush.msra.mxu0 %v804
    %854 = vmatpush.msra.mxu0 %v803
    %855 = vmatmul.f32.gmra.mxu0 %v801
    %v856 = vpop.f32.mrf.mxu0
    %v857 = vadd.f32 %v837, %v856
    %858 = vdwg.mxu0
    %859 = vmatpush.msra.mxu0 %v834
    %860 = vmatpush.msra.mxu0 %v833
    %861 = vmatpush.msra.mxu0 %v832
    %862 = vmatpush.msra.mxu0 %v831
    %863 = vmatpush.msra.mxu0 %v830
    %864 = vmatpush.msra.mxu0 %v829
    %865 = vmatpush.msra.mxu0 %v828
    %866 = vmatpush.msra.mxu0 %v827
    %867 = vmatpush.msra.mxu0 %v826
    %868 = vmatpush.msra.mxu0 %v825
    %869 = vmatpush.msra.mxu0 %v824
    %870 = vmatpush.msra.mxu0 %v823
    %871 = vmatpush.msra.mxu0 %v822
    %872 = vmatpush.msra.mxu0 %v821
    %873 = vmatpush.msra.mxu0 %v820
    %874 = vmatpush.msra.mxu0 %v819
    %875 = vmatmul.f32.gmra.mxu0 %v802
    %v876 = vpop.f32.mrf.mxu0
    %v877 = vadd.f32 %v857, %v876
    %878 = vdwg.mxu0
    %879 = vst [vmem:[#allocation7] sm:$0xff] %v877
    // Predicated region
    $region34: #{net_forward.1} parent=1 // pred_check
      _
    $region35: #{net_forward.1} parent=1 // pred_check_branch
      %881 = sbr.rel (0) target = $region37
    $region36: #{net_forward.1} parent=1 // pred_region
      %883 = vsyncadd [#allocation6], 0
      %s885 = sshll.u32 [#allocation7], 4
      %s886 = int_to_ptr.vmem [resolvable:$true] %s885
      %s887 = sshll.u32 %s8, 4
      %s888 = int_to_ptr.hbm [resolvable:$true] %s887
      %890 = dma.vmem_to_hbm [thread:$0]  %s886, 128, %s888, [#allocation6]
    $region37: #{net_forward.1} parent=1 // pred_fallthru
      _
    // Predicated region
    $region38: #{net_forward.1} parent=1 // pred_check
      _
    $region39: #{net_forward.1} parent=1 // pred_check_branch
      %892 = sbr.rel (0) target = $region41
    $region40: #{net_forward.1} parent=1 // pred_region
      %894 = dma.done [#allocation6], 128
    $region41: #{net_forward.1} parent=1 // pred_fallthru
      _
    %895 = vsyncpa [#allocation5], 1
    %896 = vsyncpa [#allocation6], 1

</llo_original>
